<compile_context>
chip_gen: v5e
topology: v5e:2x2
jax: 0.10.0
libtpu: 0.0.40
codegen_flags: <defaults>
</compile_context>

<pallas_src>
import jax
import jax.numpy as jnp
from jax.experimental import pallas as pl
from jax.experimental.pallas import tpu as pltpu

HIST = 8  # causal-history rows carried between time tiles (>= kernel_size - 1)


def _round_up(a, b):
    return (a + b - 1) // b * b


# ---------------------------------------------------------------------------
# Encoder kernel: causal Conv1d (K taps) + ReLU, tiled over (batch, time).
# ---------------------------------------------------------------------------
def _make_enc_kernel(TT, C, H, K):
    def enc_kernel(xcur_ref, xtail_ref, wenc_ref, benc_ref, enc_ref, xwin):
        j = pl.program_id(1)

        # Assemble causal window: [HIST rows of history | TT current rows].
        xwin[0:HIST, :] = jnp.zeros((HIST, C), jnp.float32)

        @pl.when(j > 0)
        def _():
            xwin[0:HIST, :] = xtail_ref[...]

        xwin[HIST:, :] = xcur_ref[...]

        # Causal conv as K shifted matmuls, f32 accumulation on the MXU.
        acc = jnp.zeros((TT, H), jnp.float32)
        for k in range(K):
            off = HIST - (K - 1) + k
            acc = acc + jnp.dot(xwin[off:off + TT, :], wenc_ref[k],
                                preferred_element_type=jnp.float32)
        enc_ref[...] = jnp.maximum(acc + benc_ref[...], 0.0)

    return enc_kernel


# ---------------------------------------------------------------------------
# Decoder kernel (tail only): Linear(H,H) -> ReLU -> Linear(H,O).
# ---------------------------------------------------------------------------
def _dec_kernel(enc_ref, w1_ref, b1_ref, w2_ref, b2_ref, y_ref):
    h = jnp.dot(enc_ref[...], w1_ref[...],
                preferred_element_type=jnp.float32) + b1_ref[...]
    h = jnp.maximum(h, 0.0)
    y_ref[...] = jnp.dot(h, w2_ref[...],
                         preferred_element_type=jnp.float32) + b2_ref[...]


def tcn_moco_forward(x, params, pred_leng, kernel_size, tile_t=4096):
    """x: (B, C, T) float32 (PyTorch Conv1d NCW). Returns (y_pred, enc_out, None)."""
    B, C, T = x.shape
    K = kernel_size
    assert K - 1 <= HIST, "kernel_size too large for the 8-row history window"
    assert tile_t % HIST == 0, "tile_t must be a multiple of 8"
    H = params["wenc"].shape[-1]
    O = params["w2"].shape[-1]

    T8 = _round_up(T, 8)
    TT = min(tile_t, T8)               # time-tile rows (multiple of 8)
    nT = -(-T8 // TT)                  # ragged last tile handled by Pallas masking

    # NCW -> NWC (single cheap transpose; no im2col duplication in HBM).
    x_btc = jnp.transpose(x, (0, 2, 1)).astype(jnp.float32)
    if T8 != T:
        x_btc = jnp.pad(x_btc, ((0, 0), (0, T8 - T), (0, 0)))

    enc_bytes = (x_btc.size * 4 + B * nT * HIST * C * 4
                 + (K * C * H + H) * 4 + B * T8 * H * 4)

    enc_full = pl.pallas_call(
        _make_enc_kernel(TT, C, H, K),
        grid=(B, nT),
        in_specs=[
            # current TT time rows of this batch element
            pl.BlockSpec((None, TT, C), lambda b, j: (b, j, 0)),
            # last HIST rows of the previous tile (same array, shifted index map)
            pl.BlockSpec((None, HIST, C),
                         lambda b, j: (b, jnp.maximum(j * (TT // HIST) - 1, 0), 0)),
            # weights / biases: constant index maps -> VMEM-resident across grid
            pl.BlockSpec((K, C, H), lambda b, j: (0, 0, 0)),
            pl.BlockSpec((1, H), lambda b, j: (0, 0)),
        ],
        out_specs=pl.BlockSpec((None, TT, H), lambda b, j: (b, j, 0)),
        out_shape=jax.ShapeDtypeStruct((B, T8, H), jnp.float32),
        scratch_shapes=[pltpu.VMEM((TT + HIST, C), jnp.float32)],
        compiler_params=pltpu.CompilerParams(
            dimension_semantics=("parallel", "parallel"),
            vmem_limit_bytes=32 * 1024 * 1024),
        cost_estimate=pl.CostEstimate(
            flops=2 * B * T8 * K * C * H, transcendentals=0,
            bytes_accessed=enc_bytes),
    )(x_btc, x_btc, params["wenc"], params["benc"])

    enc_out = enc_full[:, :T, :] if T8 != T else enc_full

    # ---- decoder on the last pred_leng rows only ----
    P = pred_leng
    Pp = _round_up(P, 8)
    enc_tail = enc_out[:, T - P:, :]
    if Pp != P:
        enc_tail = jnp.pad(enc_tail, ((0, 0), (0, Pp - P), (0, 0)))

    y_tail = pl.pallas_call(
        _dec_kernel,
        grid=(B,),
        in_specs=[
            pl.BlockSpec((None, Pp, H), lambda b: (b, 0, 0)),
            pl.BlockSpec((H, H), lambda b: (0, 0)),
            pl.BlockSpec((1, H), lambda b: (0, 0)),
            pl.BlockSpec((H, O), lambda b: (0, 0)),
            pl.BlockSpec((1, O), lambda b: (0, 0)),
        ],
        out_specs=pl.BlockSpec((None, Pp, O), lambda b: (b, 0, 0)),
        out_shape=jax.ShapeDtypeStruct((B, Pp, O), jnp.float32),
        compiler_params=pltpu.CompilerParams(
            dimension_semantics=("parallel",),
            vmem_limit_bytes=32 * 1024 * 1024),
        cost_estimate=pl.CostEstimate(
            flops=2 * B * Pp * (H * H + H * O), transcendentals=0,
            bytes_accessed=B * Pp * (H + O) * 4 + (H * H + H * O + H + O) * 4),
    )(enc_tail, params["w1"], params["b1"], params["w2"], params["b2"])

    y_pred = y_tail[:, :P, :] if Pp != P else y_tail
    return y_pred, enc_out, None


def init_params(key, in_channels, kernel_size, hidden_size, output_size):
    k_enc, k1, k2 = jax.random.split(key, 3)

    # synthetic encoder conv weight (K, C, H), xavier on (K*C, H); zero bias
    lim_e = (6.0 / (in_channels * kernel_size + hidden_size)) ** 0.5
    wenc = jax.random.uniform(k_enc, (kernel_size, in_channels, hidden_size),
                              jnp.float32, -lim_e, lim_e)
    benc = jnp.zeros((1, hidden_size), jnp.float32)

    # decoder Linears: xavier_uniform weights, zero biases (weights_init)
    lim1 = (6.0 / (hidden_size + hidden_size)) ** 0.5
    w1 = jax.random.uniform(k1, (hidden_size, hidden_size), jnp.float32, -lim1, lim1)
    b1 = jnp.zeros((1, hidden_size), jnp.float32)

    lim2 = (6.0 / (hidden_size + output_size)) ** 0.5
    w2 = jax.random.uniform(k2, (hidden_size, output_size), jnp.float32, -lim2, lim2)
    b2 = jnp.zeros((1, output_size), jnp.float32)

    return {"wenc": wenc, "benc": benc, "w1": w1, "b1": b1, "w2": w2, "b2": b2}


def reference_forward(x, params, pred_leng, K):
    """Pure-JAX f32 reference."""
    x_btc = jnp.transpose(x, (0, 2, 1)).astype(jnp.float32)
    B, T, C = x_btc.shape
    H = params["wenc"].shape[-1]
    x_hist = jnp.pad(x_btc, ((0, 0), (K - 1, 0), (0, 0)))
    acc = jnp.zeros((B, T, H), jnp.float32)
    for k in range(K):
        acc = acc + jnp.einsum("btc,ch->bth", x_hist[:, k:k + T, :],
                               params["wenc"][k])
    enc = jnp.maximum(acc + params["benc"], 0.0)
    h = jnp.maximum(jnp.einsum("bth,hk->btk", enc, params["w1"]) + params["b1"], 0.0)
    y = jnp.einsum("bth,ho->bto", h, params["w2"]) + params["b2"]
    return y[:, -pred_leng:, :], enc


if __name__ == "__main__":
    B, C, T = 2, 4, 16          # batch, input channels, sequence length (NCW)
    hidden_size = 32
    output_size = 8
    pred_leng = 4
    kernel_size = 3

    key = jax.random.PRNGKey(0)
    kx, kp = jax.random.split(key)
    x = jax.random.normal(kx, (B, C, T), jnp.float32)
    params = init_params(kp, C, kernel_size, hidden_size, output_size)

    y_pred, enc_out, _ = tcn_moco_forward(x, params, pred_leng, kernel_size)
    jax.block_until_ready((y_pred, enc_out))

    assert y_pred.shape == (B, pred_leng, output_size), y_pred.shape
    assert enc_out.shape == (B, T, hidden_size), enc_out.shape

    y_ref, enc_ref = reference_forward(x, params, pred_leng, kernel_size)
    assert jnp.allclose(enc_out, enc_ref, rtol=2e-2, atol=2e-2), \
        float(jnp.max(jnp.abs(enc_out - enc_ref)))
    assert jnp.allclose(y_pred, y_ref, rtol=2e-2, atol=2e-2), \
        float(jnp.max(jnp.abs(y_pred - y_ref)))
    print("KERNEL_OK")
</pallas_src>

<mosaic_0001>
module attributes {stable_mosaic.version = 11 : i64} {
  func.func @enc_kernel(%arg0: i32, %arg1: i32, %arg2: memref<1x16x4xf32, #tpu.memory_space<vmem>>, %arg3: memref<1x8x4xf32, #tpu.memory_space<vmem>>, %arg4: memref<3x4x32xf32, #tpu.memory_space<vmem>>, %arg5: memref<1x32xf32, #tpu.memory_space<vmem>>, %arg6: memref<1x16x32xf32, #tpu.memory_space<vmem>>, %arg7: memref<24x4xf32, #tpu.memory_space<vmem>>) attributes {dimension_semantics = [#tpu.dimension_semantics<parallel>, #tpu.dimension_semantics<parallel>], iteration_bounds = array<i64: 2, 1>, scalar_prefetch = 0 : i64, scratch_operands = 1 : i64, tpu.core_type = #tpu.core_type<tc>, window_params = [{transform_indices = @transform_0, window_bounds = array<i64: 1, 16, 4>}, {transform_indices = @transform_1, window_bounds = array<i64: 1, 8, 4>}, {pipeline_mode = #tpu.pipeline_mode<synchronous>, transform_indices = @transform_2, window_bounds = array<i64: 3, 4, 32>}, {pipeline_mode = #tpu.pipeline_mode<synchronous>, transform_indices = @transform_3, window_bounds = array<i64: 1, 32>}, {transform_indices = @transform_4, window_bounds = array<i64: 1, 16, 32>}]} {
    %cst = arith.constant 0.000000e+00 : f32
    %0 = vector.broadcast %cst : f32 to vector<8x4xf32>
    %c0 = arith.constant 0 : index
    %c0_0 = arith.constant 0 : index
    %1 = vector.load %arg7[%c0, %c0_0] : memref<24x4xf32, #tpu.memory_space<vmem>>, vector<8x4xf32>
    tpu.vector_store %arg7[%c0, %c0_0], %0 {strides = array<i32>} : memref<24x4xf32, #tpu.memory_space<vmem>>, vector<8x4xf32>,
    %c0_i32 = arith.constant 0 : i32
    %2 = arith.cmpi sgt, %arg1, %c0_i32 : i32
    %3 = arith.extui %2 : i1 to i32
    %c0_i32_1 = arith.constant 0 : i32
    %4 = arith.cmpi ne, %3, %c0_i32_1 : i32
    scf.if %4 {
      %c0_27 = arith.constant 0 : index
      %c0_28 = arith.constant 0 : index
      %c0_29 = arith.constant 0 : index
      %32 = vector.load %arg3[%c0_27, %c0_28, %c0_29] : memref<1x8x4xf32, #tpu.memory_space<vmem>>, vector<1x8x4xf32>
      %33 = vector.shape_cast %32 : vector<1x8x4xf32> to vector<8x4xf32>
      %c0_30 = arith.constant 0 : index
      %c0_31 = arith.constant 0 : index
      %34 = vector.load %arg7[%c0_30, %c0_31] : memref<24x4xf32, #tpu.memory_space<vmem>>, vector<8x4xf32>
      tpu.vector_store %arg7[%c0_30, %c0_31], %33 {strides = array<i32>} : memref<24x4xf32, #tpu.memory_space<vmem>>, vector<8x4xf32>,
    } else {
    }
    %c0_2 = arith.constant 0 : index
    %c0_3 = arith.constant 0 : index
    %c0_4 = arith.constant 0 : index
    %5 = vector.load %arg2[%c0_2, %c0_3, %c0_4] : memref<1x16x4xf32, #tpu.memory_space<vmem>>, vector<1x16x4xf32>
    %6 = vector.shape_cast %5 : vector<1x16x4xf32> to vector<16x4xf32>
    %c8 = arith.constant 8 : index
    %c0_5 = arith.constant 0 : index
    %7 = vector.load %arg7[%c8, %c0_5] : memref<24x4xf32, #tpu.memory_space<vmem>>, vector<16x4xf32>
    tpu.vector_store %arg7[%c8, %c0_5], %6 {strides = array<i32>} : memref<24x4xf32, #tpu.memory_space<vmem>>, vector<16x4xf32>,
    %cst_6 = arith.constant 0.000000e+00 : f32
    %8 = vector.broadcast %cst_6 : f32 to vector<16x32xf32>
    %c6 = arith.constant 6 : index
    %c0_7 = arith.constant 0 : index
    %9 = vector.load %arg7[%c6, %c0_7] : memref<24x4xf32, #tpu.memory_space<vmem>>, vector<16x4xf32>
    %c0_8 = arith.constant 0 : index
    %c0_9 = arith.constant 0 : index
    %c0_10 = arith.constant 0 : index
    %10 = vector.load %arg4[%c0_8, %c0_9, %c0_10] : memref<3x4x32xf32, #tpu.memory_space<vmem>>, vector<1x4x32xf32>
    %11 = vector.shape_cast %10 : vector<1x4x32xf32> to vector<4x32xf32>
    %cst_11 = arith.constant dense<0.000000e+00> : vector<16x32xf32>
    %12 = tpu.matmul %9, %11, %cst_11 {dimension_numbers = #tpu.dot_dimension_numbers<[1], [0], [0], [1], [0, 0, 1, 1], [], []>} : vector<16x4xf32>, vector<4x32xf32>, vector<16x32xf32> -> vector<16x32xf32>
    %13 = arith.addf %8, %12 : vector<16x32xf32>
    %c7 = arith.constant 7 : index
    %c0_12 = arith.constant 0 : index
    %14 = vector.load %arg7[%c7, %c0_12] : memref<24x4xf32, #tpu.memory_space<vmem>>, vector<16x4xf32>
    %c1 = arith.constant 1 : index
    %c0_13 = arith.constant 0 : index
    %c0_14 = arith.constant 0 : index
    %15 = vector.load %arg4[%c1, %c0_13, %c0_14] : memref<3x4x32xf32, #tpu.memory_space<vmem>>, vector<1x4x32xf32>
    %16 = vector.shape_cast %15 : vector<1x4x32xf32> to vector<4x32xf32>
    %cst_15 = arith.constant dense<0.000000e+00> : vector<16x32xf32>
    %17 = tpu.matmul %14, %16, %cst_15 {dimension_numbers = #tpu.dot_dimension_numbers<[1], [0], [0], [1], [0, 0, 1, 1], [], []>} : vector<16x4xf32>, vector<4x32xf32>, vector<16x32xf32> -> vector<16x32xf32>
    %18 = arith.addf %13, %17 : vector<16x32xf32>
    %c8_16 = arith.constant 8 : index
    %c0_17 = arith.constant 0 : index
    %19 = vector.load %arg7[%c8_16, %c0_17] : memref<24x4xf32, #tpu.memory_space<vmem>>, vector<16x4xf32>
    %c2 = arith.constant 2 : index
    %c0_18 = arith.constant 0 : index
    %c0_19 = arith.constant 0 : index
    %20 = vector.load %arg4[%c2, %c0_18, %c0_19] : memref<3x4x32xf32, #tpu.memory_space<vmem>>, vector<1x4x32xf32>
    %21 = vector.shape_cast %20 : vector<1x4x32xf32> to vector<4x32xf32>
    %cst_20 = arith.constant dense<0.000000e+00> : vector<16x32xf32>
    %22 = tpu.matmul %19, %21, %cst_20 {dimension_numbers = #tpu.dot_dimension_numbers<[1], [0], [0], [1], [0, 0, 1, 1], [], []>} : vector<16x4xf32>, vector<4x32xf32>, vector<16x32xf32> -> vector<16x32xf32>
    %23 = arith.addf %18, %22 : vector<16x32xf32>
    %c0_21 = arith.constant 0 : index
    %c0_22 = arith.constant 0 : index
    %24 = vector.load %arg5[%c0_21, %c0_22] : memref<1x32xf32, #tpu.memory_space<vmem>>, vector<1x32xf32>
    %25 = vector.broadcast %24 : vector<1x32xf32> to vector<16x32xf32>
    %26 = arith.addf %23, %25 : vector<16x32xf32>
    %cst_23 = arith.constant 0.000000e+00 : f32
    %27 = vector.broadcast %cst_23 : f32 to vector<16x32xf32>
    %28 = arith.maximumf %26, %27 : vector<16x32xf32>
    %c0_24 = arith.constant 0 : index
    %c0_25 = arith.constant 0 : index
    %c0_26 = arith.constant 0 : index
    %29 = vector.load %arg6[%c0_24, %c0_25, %c0_26] : memref<1x16x32xf32, #tpu.memory_space<vmem>>, vector<1x16x32xf32>
    %30 = vector.shape_cast %29 : vector<1x16x32xf32> to vector<16x32xf32>
    %31 = vector.shape_cast %28 : vector<16x32xf32> to vector<1x16x32xf32>
    tpu.vector_store %arg6[%c0_24, %c0_25, %c0_26], %31 {strides = array<i32>} : memref<1x16x32xf32, #tpu.memory_space<vmem>>, vector<1x16x32xf32>,
    return
  }
  func.func @transform_0(%arg0: i32, %arg1: i32) -> (i32, i32, i32) {
    %c0_i32 = arith.constant 0 : i32
    %c0_i32_0 = arith.constant 0 : i32
    return %arg0, %arg1, %c0_i32 : i32, i32, i32
  }
  func.func @transform_1(%arg0: i32, %arg1: i32) -> (i32, i32, i32) {
    %c2_i32 = arith.constant 2 : i32
    %0 = arith.muli %arg1, %c2_i32 : i32
    %c1_i32 = arith.constant 1 : i32
    %1 = arith.subi %0, %c1_i32 : i32
    %c0_i32 = arith.constant 0 : i32
    %2 = arith.maxsi %1, %c0_i32 : i32
    %c0_i32_0 = arith.constant 0 : i32
    %c0_i32_1 = arith.constant 0 : i32
    return %arg0, %2, %c0_i32_0 : i32, i32, i32
  }
  func.func @transform_2(%arg0: i32, %arg1: i32) -> (i32, i32, i32) {
    %c0_i32 = arith.constant 0 : i32
    %c0_i32_0 = arith.constant 0 : i32
    %c0_i32_1 = arith.constant 0 : i32
    %c0_i32_2 = arith.constant 0 : i32
    return %c0_i32, %c0_i32_0, %c0_i32_1 : i32, i32, i32
  }
  func.func @transform_3(%arg0: i32, %arg1: i32) -> (i32, i32) {
    %c0_i32 = arith.constant 0 : i32
    %c0_i32_0 = arith.constant 0 : i32
    %c0_i32_1 = arith.constant 0 : i32
    return %c0_i32, %c0_i32_0 : i32, i32
  }
  func.func @transform_4(%arg0: i32, %arg1: i32) -> (i32, i32, i32) {
    %c0_i32 = arith.constant 0 : i32
    %c0_i32_0 = arith.constant 0 : i32
    return %arg0, %arg1, %c0_i32 : i32, i32, i32
  }
}

</mosaic_0001>

<llo_original>
// kernel: tpu_custom_call.1
$region0: #{tpu_custom_call.1}
  #allocation0 [shape = 'u32[]', space=smem, size = 0x4, offset = 0x4, fixed_abs, tag = 'smem constant byte address 0x4 - core index']
  #allocation1 [shape = 'u32[72,128]{1,0:T(1,128)}', space=vmem, size = 0x9000, scoped, tag = 'internal scratch']
  #allocation2 [shape = 'f32[24,4]{1,0:T(8,128)}', space=vmem, size = 0x3000, scoped, tag = 'scratch operand']
  %s0 = inlined_call_operand.vmem [shape: f32[2,16,4], index: 0, kind: input, shape index: {}]
  %s1 = inlined_call_operand.vmem [shape: f32[2,16,4], index: 1, kind: input, shape index: {}]
  %s2 = inlined_call_operand.vmem [shape: f32[3,4,32], index: 2, kind: input, shape index: {}]
  %s3 = inlined_call_operand.vmem [shape: f32[1,32], index: 3, kind: input, shape index: {}]
  %s4 = inlined_call_operand.hbm [shape: f32[2,16,32], index: 4, kind: output, shape index: {}]
  %s5 = sld [smem:[#allocation0]]
  $region53: #{tpu_custom_call.1} parent=0
    _
  %s7 = ssub.s32 1, %s5
  %s8 = scalar_select 0, %s7, %s5
  $region1: #{tpu_custom_call.1} parent=0
    #allocation3 [shape = 'u8[16384]{0}', space=vmem, size = 0x4000, scoped, tag = 'output window, operand 0']
    #allocation4 [shape = 's32[2]{0}', space=sflag, size = 0x8, scoped, tag = 'scoped memory for tpu_custom_call.1']
    %9 = vsyncpa [#allocation4], 0
    %s10 = scalar_lea.sflag [#allocation4], 1
    %11 = vsyncpa %s10, 0
    loop: start=0, step=1, limit=4
    $region2: #{tpu_custom_call.1} parent=1 // loop_pre_header
      _
    $region3: #{tpu_custom_call.1} parent=1 // loop_header
      %s13 = sphi 0, %s17
      %p14 = scmp.ge.s32.totalorder %s13, 4
      %s20 = sphi 0, %s32
      %s21 = sphi 0, %s28
      %s22 = sphi 0, %s20
      %s23 = sphi 0, %s21
      %s24 = sphi 0, %s22
      %s25 = sphi 0, %s23
      %s37 = sphi 0, %s39
      %s40 = sphi 0, %s37
      %s41 = sphi 0, %s40
      %s57 = sphi 0, %s41
      %s73 = sphi 0, %s75
      %s76 = sphi 0, %s73
      %s77 = sphi 0, %s76
      %s93 = sphi 0, %s77
      %s97 = sphi 0, %s97
      %s99 = sphi 0, %s97
      %s100 = sphi 0, %s99
      %s114 = sphi 0, %s100
      %s118 = sphi 0, %s118
      %s120 = sphi 0, %s118
      %s121 = sphi 0, %s120
      %s135 = sphi 0, %s121
      %s143 = sphi 0, %s145
      %s146 = sphi 0, %s143
      %s147 = sphi 0, %s146
      %s163 = sphi 0, %s147
    $region4: #{tpu_custom_call.1} parent=1 // loop_header_branch
      %16 = sbr.rel (%p14) target = $region8
    $region5: #{tpu_custom_call.1} parent=1 // loop_body
      %s18 = ssub.s32 %s13, 1
      %s19 = ssub.s32 %s13, 2
      %s26 = sadd.s32 1, %s21
      %p27 = scmp.ge.s32.totalorder %s26, 1
      %s28 = scalar_select %p27, 0, %s26
      %s29 = sadd.s32 1, %s20
      %s30 = scalar_select %p27, %s29, %s20
      %p31 = scmp.ge.s32.totalorder %s30, 2
      %s32 = scalar_select %p31, 0, %s30
      %s33 = ssub.s32 %s20, %s32
      %s34 = ssub.s32 %s21, %s28
      %s35 = sor.u32 %s33, %s34
      %p36 = scmp.eq.s32.totalorder %s35, 0
      %s38 = sadd.s32 %s37, 1
      %s39 = scalar_select %p36, %s37, %s38
      %p42 = pneg %p36
      %p43 = scmp.eq.s32.totalorder %s13, 1
      %p44 = por %p42, %p43
      %p45 = scmp.ne.s32.totalorder %s37, %s40
      %p46 = scmp.eq.s32.totalorder %s13, 0
      %p47 = por %p45, %p46
      %p48 = scmp.ne.s32.totalorder %s37, %s40
      %p49 = scmp.eq.s32.totalorder %s18, 1
      %p50 = por %p48, %p49
      %p51 = scmp.ne.s32.totalorder %s40, %s41
      %p52 = scmp.eq.s32.totalorder %s18, 0
      %p53 = por %p51, %p52
      %p54 = scmp.ne.s32.totalorder %s40, %s41
      %p55 = scmp.eq.s32.totalorder %s19, 1
      %p56 = por %p54, %p55
      %p58 = scmp.ne.s32.totalorder %s41, %s57
      %p59 = scmp.eq.s32.totalorder %s19, 0
      %p60 = por %p58, %p59
      %s61 = smul.u32 %s21, 2
      %s62 = ssub.s32 %s61, 1
      %p63 = scmp.gt.s32.totalorder %s62, 0
      %s64 = scalar_select %p63, %s62, 0
      %s65 = smul.u32 %s28, 2
      %s66 = ssub.s32 %s65, 1
      %p67 = scmp.gt.s32.totalorder %s66, 0
      %s68 = scalar_select %p67, %s66, 0
      %s69 = ssub.s32 %s20, %s32
      %s70 = ssub.s32 %s64, %s68
      %s71 = sor.u32 %s69, %s70
      %p72 = scmp.eq.s32.totalorder %s71, 0
      %s74 = sadd.s32 %s73, 1
      %s75 = scalar_select %p72, %s73, %s74
      %p78 = pneg %p72
      %p79 = scmp.eq.s32.totalorder %s13, 1
      %p80 = por %p78, %p79
      %p81 = scmp.ne.s32.totalorder %s73, %s76
      %p82 = scmp.eq.s32.totalorder %s13, 0
      %p83 = por %p81, %p82
      %p84 = scmp.ne.s32.totalorder %s73, %s76
      %p85 = scmp.eq.s32.totalorder %s18, 1
      %p86 = por %p84, %p85
      %p87 = scmp.ne.s32.totalorder %s76, %s77
      %p88 = scmp.eq.s32.totalorder %s18, 0
      %p89 = por %p87, %p88
      %p90 = scmp.ne.s32.totalorder %s76, %s77
      %p91 = scmp.eq.s32.totalorder %s19, 1
      %p92 = por %p90, %p91
      %p94 = scmp.ne.s32.totalorder %s77, %s93
      %p95 = scmp.eq.s32.totalorder %s19, 0
      %p96 = por %p94, %p95
      %s98 = sadd.s32 %s97, 1
      %p101 = scmp.eq.s32.totalorder %s13, 1
      %p102 = scmp.ne.s32.totalorder %s97, %s99
      %p103 = scmp.eq.s32.totalorder %s13, 0
      %p104 = por %p102, %p103
      %p105 = scmp.ne.s32.totalorder %s97, %s99
      %p106 = scmp.eq.s32.totalorder %s18, 1
      %p107 = por %p105, %p106
      %p108 = scmp.ne.s32.totalorder %s99, %s100
      %p109 = scmp.eq.s32.totalorder %s18, 0
      %p110 = por %p108, %p109
      %p111 = scmp.ne.s32.totalorder %s99, %s100
      %p112 = scmp.eq.s32.totalorder %s19, 1
      %p113 = por %p111, %p112
      %p115 = scmp.ne.s32.totalorder %s100, %s114
      %p116 = scmp.eq.s32.totalorder %s19, 0
      %p117 = por %p115, %p116
      %s119 = sadd.s32 %s118, 1
      %p122 = scmp.eq.s32.totalorder %s13, 1
      %p123 = scmp.ne.s32.totalorder %s118, %s120
      %p124 = scmp.eq.s32.totalorder %s13, 0
      %p125 = por %p123, %p124
      %p126 = scmp.ne.s32.totalorder %s118, %s120
      %p127 = scmp.eq.s32.totalorder %s18, 1
      %p128 = por %p126, %p127
      %p129 = scmp.ne.s32.totalorder %s120, %s121
      %p130 = scmp.eq.s32.totalorder %s18, 0
      %p131 = por %p129, %p130
      %p132 = scmp.ne.s32.totalorder %s120, %s121
      %p133 = scmp.eq.s32.totalorder %s19, 1
      %p134 = por %p132, %p133
      %p136 = scmp.ne.s32.totalorder %s121, %s135
      %p137 = scmp.eq.s32.totalorder %s19, 0
      %p138 = por %p136, %p137
      %s139 = ssub.s32 %s20, %s32
      %s140 = ssub.s32 %s21, %s28
      %s141 = sor.u32 %s139, %s140
      %p142 = scmp.eq.s32.totalorder %s141, 0
      %s144 = sadd.s32 %s143, 1
      %s145 = scalar_select %p142, %s143, %s144
      %p148 = pneg %p142
      %p149 = scmp.eq.s32.totalorder %s13, 1
      %p150 = por %p148, %p149
      %p151 = scmp.ne.s32.totalorder %s143, %s146
      %p152 = scmp.eq.s32.totalorder %s13, 0
      %p153 = por %p151, %p152
      %p154 = scmp.ne.s32.totalorder %s143, %s146
      %p155 = scmp.eq.s32.totalorder %s18, 1
      %p156 = por %p154, %p155
      %p157 = scmp.ne.s32.totalorder %s146, %s147
      %p158 = scmp.eq.s32.totalorder %s18, 0
      %p159 = por %p157, %p158
      %p160 = scmp.ne.s32.totalorder %s146, %s147
      %p161 = scmp.eq.s32.totalorder %s19, 1
      %p162 = por %p160, %p161
      %p164 = scmp.ne.s32.totalorder %s147, %s163
      %p165 = scmp.eq.s32.totalorder %s19, 0
      %p166 = por %p164, %p165
      %p167 = scmp.le.s32.totalorder 1, %s13
      %p168 = scmp.lt.s32.totalorder %s13, 3
      %p169 = pnand %p167, %p168
      %p170 = pneg %p169
      // Predicated region
      $region9: #{tpu_custom_call.1} parent=5 // pred_check
        _
      $region10: #{tpu_custom_call.1} parent=5 // pred_check_branch
        %172 = sbr.rel (%p169) target = $region12
      $region11: #{tpu_custom_call.1} parent=5 // pred_region
        %s173 = ssub.s32 %s13, 1
        // Predicated region
        $region13: #{tpu_custom_call.1} parent=11 // pred_check
          %p174 = pneg %p110
        $region14: #{tpu_custom_call.1} parent=11 // pred_check_branch
          %176 = sbr.rel (%p174) target = $region16
        $region15: #{tpu_custom_call.1} parent=11 // pred_region
          _
        $region16: #{tpu_custom_call.1} parent=11 // pred_fallthru
          _
        // Predicated region
        $region17: #{tpu_custom_call.1} parent=11 // pred_check
          %p177 = pneg %p131
        $region18: #{tpu_custom_call.1} parent=11 // pred_check_branch
          %179 = sbr.rel (%p177) target = $region20
        $region19: #{tpu_custom_call.1} parent=11 // pred_region
          _
        $region20: #{tpu_custom_call.1} parent=11 // pred_fallthru
          _
      $region12: #{tpu_custom_call.1} parent=5 // pred_fallthru
        _
      %p180 = scmp.lt.s32.totalorder %s13, 2
      // Predicated region
      $region21: #{tpu_custom_call.1} parent=5 // pred_check
        %p181 = pneg %p180
      $region22: #{tpu_custom_call.1} parent=5 // pred_check_branch
        %183 = sbr.rel (%p181) target = $region24
      $region23: #{tpu_custom_call.1} parent=5 // pred_region
        // Predicated region
        $region25: #{tpu_custom_call.1} parent=23 // pred_check
          %p184 = pneg %p47
        $region26: #{tpu_custom_call.1} parent=23 // pred_check_branch
          %186 = sbr.rel (%p184) target = $region28
        $region27: #{tpu_custom_call.1} parent=23 // pred_region
          %s187 = smul.u32 2, %s21
          %p188 = scmp.lt.s32.totalorder %s20, 1
          %s189 = scalar_select %p188, %s20, 1
          %p190 = scmp.lt.s32.totalorder %s187, 1
          %s191 = scalar_select %p190, %s187, 1
          %s192 = smul.addr %s189, 2
          %s193 = sadd.s32 %s191, %s192
          %s194 = smul.addr %s193, 8
          %s195 = scalar_lea.vmem %s0, %s194
          %s196 = smul.u32 2, %s21
        $region28: #{tpu_custom_call.1} parent=23 // pred_fallthru
          _
        // Predicated region
        $region29: #{tpu_custom_call.1} parent=23 // pred_check
          %p197 = pneg %p83
        $region30: #{tpu_custom_call.1} parent=23 // pred_check_branch
          %199 = sbr.rel (%p197) target = $region32
        $region31: #{tpu_custom_call.1} parent=23 // pred_region
          %s200 = smul.u32 %s21, 2
          %s201 = ssub.s32 %s200, 1
          %p202 = scmp.gt.s32.totalorder %s201, 0
          %s203 = scalar_select %p202, %s201, 0
          %p204 = scmp.lt.s32.totalorder %s20, 1
          %s205 = scalar_select %p204, %s20, 1
          %p206 = scmp.lt.s32.totalorder %s203, 1
          %s207 = scalar_select %p206, %s203, 1
          %s208 = smul.addr %s205, 2
          %s209 = sadd.s32 %s207, %s208
          %s210 = smul.addr %s209, 8
          %s211 = scalar_lea.vmem %s1, %s210
          %s212 = smul.u32 %s21, 2
          %s213 = ssub.s32 %s212, 1
          %p214 = scmp.gt.s32.totalorder %s213, 0
          %s215 = scalar_select %p214, %s213, 0
        $region32: #{tpu_custom_call.1} parent=23 // pred_fallthru
          _
      $region24: #{tpu_custom_call.1} parent=5 // pred_fallthru
        _
      %p216 = scmp.le.s32.totalorder 1, %s13
      %p217 = scmp.lt.s32.totalorder %s13, 3
      %p218 = pnand %p216, %p217
      %p219 = pneg %p218
      // Predicated region
      $region33: #{tpu_custom_call.1} parent=5 // pred_check
        _
      $region34: #{tpu_custom_call.1} parent=5 // pred_check_branch
        %221 = sbr.rel (%p218) target = $region36
      $region35: #{tpu_custom_call.1} parent=5 // pred_region
        %s222 = ssub.s32 %s13, 1
        %s223 = smul.u32 2, %s23
        %p224 = scmp.lt.s32.totalorder %s22, 1
        %s225 = scalar_select %p224, %s22, 1
        %p226 = scmp.lt.s32.totalorder %s223, 1
        %s227 = scalar_select %p226, %s223, 1
        %s228 = smul.addr %s225, 2
        %s229 = sadd.s32 %s227, %s228
        %s230 = smul.addr %s229, 8
        %s231 = scalar_lea.vmem %s0, %s230
        %p232 = pneg %p53
        %p233 = pneg %p50
        %s234 = smul.u32 %s23, 2
        %s235 = ssub.s32 %s234, 1
        %p236 = scmp.gt.s32.totalorder %s235, 0
        %s237 = scalar_select %p236, %s235, 0
        %p238 = scmp.lt.s32.totalorder %s22, 1
        %s239 = scalar_select %p238, %s22, 1
        %p240 = scmp.lt.s32.totalorder %s237, 1
        %s241 = scalar_select %p240, %s237, 1
        %s242 = smul.addr %s239, 2
        %s243 = sadd.s32 %s241, %s242
        %s244 = smul.addr %s243, 8
        %s245 = scalar_lea.vmem %s1, %s244
        %p246 = pneg %p89
        %p247 = pneg %p86
        %p248 = pneg %p110
        %p249 = pneg %p107
        %p250 = pneg %p131
        %p251 = pneg %p128
        %p252 = pneg %p159
        %p253 = pneg %p156
        %s254 = sand.u32 %s146, 1
        %s255 = scalar_lea.sflag [#allocation4], %s254
        %s256 = sand.u32 %s146, 1
        %s257 = smul.addr %s256, 16
        %s258 = scalar_lea.vmem [#allocation3], %s257
        %s259 = smul.u32 2, %s23
        %p260 = scmp.lt.s32.totalorder %s22, 1
        %s261 = scalar_select %p260, %s22, 1
        %p262 = scmp.lt.s32.totalorder %s259, 1
        %s263 = scalar_select %p262, %s259, 1
        %s264 = smul.addr %s261, 2
        %s265 = sadd.s32 %s263, %s264
        %s266 = smul.addr %s265, 8
        %s267 = scalar_lea.vmem %s0, %s266
        %s268 = smul.u32 2, %s23
        %s269 = smul.u32 %s23, 2
        %s270 = ssub.s32 %s269, 1
        %p271 = scmp.gt.s32.totalorder %s270, 0
        %s272 = scalar_select %p271, %s270, 0
        %p273 = scmp.lt.s32.totalorder %s22, 1
        %s274 = scalar_select %p273, %s22, 1
        %p275 = scmp.lt.s32.totalorder %s272, 1
        %s276 = scalar_select %p275, %s272, 1
        %s277 = smul.addr %s274, 2
        %s278 = sadd.s32 %s276, %s277
        %s279 = smul.addr %s278, 8
        %s280 = scalar_lea.vmem %s1, %s279
        %s281 = smul.u32 %s23, 2
        %s282 = ssub.s32 %s281, 1
        %p283 = scmp.gt.s32.totalorder %s282, 0
        %s284 = scalar_select %p283, %s282, 0
        %s285 = smul.u32 2, %s23
        %vm286 = vcmask 31744
        %287 = vst.msk [vmem:[#allocation2] sm:$0xff] %vm286, 0.0
        %p288 = scmp.gt.s32.totalorder %s23, 0
        // Predicated region
        $region37: #{tpu_custom_call.1} parent=35 // pred_check
          %p289 = pneg %p288
        $region38: #{tpu_custom_call.1} parent=35 // pred_check_branch
          %291 = sbr.rel (%p289) target = $region40
        $region39: #{tpu_custom_call.1} parent=35 // pred_region
          %v292 = vld [vmem:[%s280] sm:$0xff]
          %293 = vst.msk [vmem:[#allocation2] sm:$0xff] %vm286, %v292
        $region40: #{tpu_custom_call.1} parent=35 // pred_fallthru
          _
        %v294 = vld [vmem:[%s267] sm:$0xff]
        %v295 = vld [vmem:[%s267 + $0x8] sm:$0xff]
        %296 = vst.msk [vmem:[#allocation2 + $0x8] sm:$0xff] %vm286, %v294
        %297 = vst.msk [vmem:[#allocation2 + $0x10] sm:$0xff] %vm286, %v295
        %v298 = vld [vmem:[#allocation2 + $0x6] sm:$0xff]
        %v299 = vld [vmem:[#allocation2 + $0xe] sm:$0xff]
        %v300 = vld [vmem:[%s2] sm:$0xf]
        %v301 = vld [vmem:[#allocation2 + $0x7] sm:$0xff]
        %v302 = vld [vmem:[#allocation2 + $0xf] sm:$0xff]
        %s303 = scalar_lea.vmem %s2, 4
        %v304 = vld [vmem:[%s303] sm:$0xf]
        %v306 = vsel %vm286, %v301, 0
        %v309 = vsel %vm286, %v302, 0
        %vm311 = vcmask 1043456
        %v313 = vsel %vm311, %v304, 0
        %315 = vmatpush.msra.mxu0 0.0
        %316 = vmatpush.msra.mxu0 0.0
        %317 = vmatpush.msra.mxu0 0.0
        %318 = vmatpush.msra.mxu0 0.0
        %319 = vmatpush.msra.mxu0 0.0
        %320 = vmatpush.msra.mxu0 0.0
        %321 = vmatpush.msra.mxu0 0.0
        %322 = vmatpush.msra.mxu0 0.0
        %323 = vmatpush.msra.mxu0 0.0
        %324 = vmatpush.msra.mxu0 0.0
        %325 = vmatpush.msra.mxu0 0.0
        %326 = vmatpush.msra.mxu0 0.0
        %327 = vmatpush.msra.mxu0 0.0
        %328 = vmatpush.msra.mxu0 0.0
        %329 = vmatpush.msra.mxu0 0.0
        %330 = vmatpush.msra.mxu0 %v313
        %331 = vmatmul.f32.gmra.mxu0 %v306
        %v332 = vpop.f32.mrf.mxu0
        %v333 = vadd.f32 0.0, %v332
        %334 = vmatmul.f32.gmra.mxu0 %v309
        %v335 = vpop.f32.mrf.mxu0
        %v336 = vadd.f32 0.0, %v335
        %337 = vdwg.mxu0
        %v339 = vsel %vm286, %v298, 0
        %v342 = vsel %vm286, %v299, 0
        %v345 = vsel %vm311, %v300, 0
        %347 = vmatpush.msra.mxu0 0.0
        %348 = vmatpush.msra.mxu0 0.0
        %349 = vmatpush.msra.mxu0 0.0
        %350 = vmatpush.msra.mxu0 0.0
        %351 = vmatpush.msra.mxu0 0.0
        %352 = vmatpush.msra.mxu0 0.0
        %353 = vmatpush.msra.mxu0 0.0
        %354 = vmatpush.msra.mxu0 0.0
        %355 = vmatpush.msra.mxu0 0.0
        %356 = vmatpush.msra.mxu0 0.0
        %357 = vmatpush.msra.mxu0 0.0
        %358 = vmatpush.msra.mxu0 0.0
        %359 = vmatpush.msra.mxu0 0.0
        %360 = vmatpush.msra.mxu0 0.0
        %361 = vmatpush.msra.mxu0 0.0
        %362 = vmatpush.msra.mxu0 %v345
        %363 = vmatmul.f32.gmra.mxu0 %v339
        %v364 = vpop.f32.mrf.mxu0
        %v365 = vadd.f32 %v333, %v364
        %366 = vmatmul.f32.gmra.mxu0 %v342
        %v367 = vpop.f32.mrf.mxu0
        %v368 = vadd.f32 %v336, %v367
        %369 = vdwg.mxu0
        %v370 = vld [vmem:[#allocation2 + $0x8] sm:$0xff]
        %v371 = vld [vmem:[#allocation2 + $0x10] sm:$0xff]
        %s372 = scalar_lea.vmem %s2, 8
        %v373 = vld [vmem:[%s372] sm:$0xf]
        %v375 = vsel %vm286, %v370, 0
        %v378 = vsel %vm286, %v371, 0
        %v381 = vsel %vm311, %v373, 0
        %383 = vmatpush.msra.mxu0 0.0
        %384 = vmatpush.msra.mxu0 0.0
        %385 = vmatpush.msra.mxu0 0.0
        %386 = vmatpush.msra.mxu0 0.0
        %387 = vmatpush.msra.mxu0 0.0
        %388 = vmatpush.msra.mxu0 0.0
        %389 = vmatpush.msra.mxu0 0.0
        %390 = vmatpush.msra.mxu0 0.0
        %391 = vmatpush.msra.mxu0 0.0
        %392 = vmatpush.msra.mxu0 0.0
        %393 = vmatpush.msra.mxu0 0.0
        %394 = vmatpush.msra.mxu0 0.0
        %395 = vmatpush.msra.mxu0 0.0
        %396 = vmatpush.msra.mxu0 0.0
        %397 = vmatpush.msra.mxu0 0.0
        %398 = vmatpush.msra.mxu0 %v381
        %399 = vmatmul.f32.gmra.mxu0 %v375
        %v400 = vpop.f32.mrf.mxu0
        %v401 = vadd.f32 0.0, %v400
        %402 = vmatmul.f32.gmra.mxu0 %v378
        %v403 = vpop.f32.mrf.mxu0
        %v404 = vadd.f32 0.0, %v403
        %405 = vdwg.mxu0
        %v406 = vadd.f32 %v365, %v401
        %v407 = vadd.f32 %v368, %v404
        %v408 = vld [vmem:[%s3] sm:$0x1]
        %v410 = vperm.slane %v408, 0
        %v412 = vadd.f32 %v406, %v410
        %v413 = vadd.f32 %v407, %v410
        %v414 = vmax.f32 %v412, 0.0
        %v415 = vmax.f32 %v413, 0.0
        %vm416 = vcmask 261120
        %417 = vst.msk [vmem:[%s258] sm:$0xff] %vm416, %v414
        %418 = vst.msk [vmem:[%s258 + $0x8] sm:$0xff] %vm416, %v415
        %s419 = sand.u32 %s146, 1
        %s420 = scalar_lea.sflag [#allocation4], %s419
        %s421 = sand.u32 %s146, 1
        %s422 = smul.addr %s421, 16
        %s423 = scalar_lea.vmem [#allocation3], %s422
        // Predicated region
        $region41: #{tpu_custom_call.1} parent=35 // pred_check
          %p424 = pneg %p156
        $region42: #{tpu_custom_call.1} parent=35 // pred_check_branch
          %426 = sbr.rel (%p424) target = $region44
        $region43: #{tpu_custom_call.1} parent=35 // pred_region
          %s427 = smul.u32 2, %s23
          %429 = vsyncadd %s420, 0
          %s430 = smul.addr %s22, 2
          %s431 = sadd.s32 %s427, %s430
          %s432 = smul.addr %s431, 8
          %s433 = scalar_lea.hbm %s4, %s432
          %s434 = sshll.u32 %s423, 4
          %s435 = int_to_ptr.vmem [resolvable:$true] %s434
          %s436 = sshll.u32 %s433, 4
          %s437 = int_to_ptr.hbm [resolvable:$true] %s436
          %442 = dma.vmem_to_hbm [thread:$0]  %s435, 256, %s437, %s420, 128, 128, 8
        $region44: #{tpu_custom_call.1} parent=35 // pred_fallthru
          _
      $region36: #{tpu_custom_call.1} parent=5 // pred_fallthru
        _
      %p443 = scmp.le.s32.totalorder 2, %s13
      // Predicated region
      $region45: #{tpu_custom_call.1} parent=5 // pred_check
        %p444 = pneg %p443
      $region46: #{tpu_custom_call.1} parent=5 // pred_check_branch
        %446 = sbr.rel (%p444) target = $region48
      $region47: #{tpu_custom_call.1} parent=5 // pred_region
        %s447 = ssub.s32 %s13, 2
        // Predicated region
        $region49: #{tpu_custom_call.1} parent=47 // pred_check
          %p448 = pneg %p162
        $region50: #{tpu_custom_call.1} parent=47 // pred_check_branch
          %450 = sbr.rel (%p448) target = $region52
        $region51: #{tpu_custom_call.1} parent=47 // pred_region
          %s451 = sand.u32 %s147, 1
          %s452 = scalar_lea.sflag [#allocation4], %s451
          %s453 = sand.u32 %s147, 1
          %s454 = smul.addr %s453, 16
          %s455 = scalar_lea.vmem [#allocation3], %s454
          %457 = dma.done %s452, 256
        $region52: #{tpu_custom_call.1} parent=47 // pred_fallthru
          _
      $region48: #{tpu_custom_call.1} parent=5 // pred_fallthru
        _
    $region6: #{tpu_custom_call.1} parent=1 // loop_footer
      %s17 = sadd.s32 1, %s13
    $region7: #{tpu_custom_call.1} parent=1 // loop_footer_branch
      %12 = sbr.rel target = $region3
    $region8: #{tpu_custom_call.1} parent=1 // loop_exit
      _
    %458 = vsyncpa [#allocation4], 1
    %s459 = scalar_lea.sflag [#allocation4], 1
    %460 = vsyncpa %s459, 1

</llo_original>
